<compile_context>
chip_gen: v7x
topology: tpu7x:2x2x1
jax: 0.10.0
libtpu: 0.0.40
codegen_flags: <defaults>
</compile_context>

<pallas_src>
import functools

import jax
import jax.numpy as jnp
from jax.experimental import pallas as pl
from jax.experimental.pallas import tpu as pltpu

HIDDEN = 30            # fixed by the PyTorch module
LANE = 128             # TPU lane width
SUBLANE = 8
DEFAULT_BLOCK_B = 4096
DEFAULT_MIN_PALLAS_BATCH = 1024


def _round_up(n, m):
    return ((n + m - 1) // m) * m


def anet_kernel(x_ref, w1_ref, b1_ref, w2_ref, b2_ref, o_ref):
    """One batch tile (batch on the lane axis of the outputs).

    x_ref : (TB, s_dim)     input dtype (f32 or bf16)
    w1_ref: (H_pad, s_dim)  bf16  (PyTorch fc1.weight layout, hidden-padded)
    b1_ref: (H_pad, 1)      f32
    w2_ref: (a_dim, H_pad)  bf16  (PyTorch out.weight layout, hidden-padded)
    b2_ref: (a_dim, 1)      f32
    o_ref : (a_dim, TB)     f32
    """
    x_bf = x_ref[...].astype(jnp.bfloat16)          # VPU cast, stays in vregs

    # fc1: h^T = W1 @ x^T -> (H_pad, TB).  Contract s_dim (last dim of both
    # operands, the q.k^T pattern) so batch lands on the 128-lane axis.
    h = jax.lax.dot_general(
        w1_ref[...], x_bf,
        dimension_numbers=(((1,), (1,)), ((), ())),
        preferred_element_type=jnp.float32)
    h = jnp.maximum(h + b1_ref[...], 0.0)           # bias + ReLU in f32

    # out: a^T = W2 @ h^T -> (a_dim, TB), then bias + tanh in f32.
    a = jnp.dot(w2_ref[...], h.astype(jnp.bfloat16),
                preferred_element_type=jnp.float32)
    o_ref[...] = jnp.tanh(a + b2_ref[...]).astype(o_ref.dtype)


def _reference(x, w1, b1, w2, b2):
    """Plain fused XLA forward (also the small-batch fast path)."""
    b1 = jnp.asarray(b1, jnp.float32).reshape(1, -1)
    b2 = jnp.asarray(b2, jnp.float32).reshape(1, -1)
    h = jnp.maximum(x @ w1.T + b1, 0.0)
    return jnp.tanh(h @ w2.T + b2)


@functools.partial(jax.jit, static_argnames=("block_b", "min_pallas_batch"))
def anet_forward(x, w1, b1, w2, b2, *, block_b=DEFAULT_BLOCK_B,
                 min_pallas_batch=DEFAULT_MIN_PALLAS_BATCH):
    """ANet forward.  x: (B, s_dim) float32.  Weights in PyTorch-native
    layout: w1 (HIDDEN, s_dim), b1 (HIDDEN,), w2 (a_dim, HIDDEN), b2 (a_dim,).
    Returns (B, a_dim) float32."""
    B, s_dim = x.shape
    a_dim = w2.shape[0]

    # Tiny batches: the whole net is a couple of vregs; the fused XLA graph
    # beats pallas_call launch + DMA setup.
    if B < min_pallas_batch:
        return _reference(x, w1, b1, w2, b2)

    # ---- resident weights: bf16, hidden padded 30 -> 32 (zero rows/cols) ----
    h_pad = _round_up(HIDDEN, SUBLANE)
    w1p = jnp.zeros((h_pad, s_dim), jnp.bfloat16).at[:HIDDEN, :].set(
        w1.astype(jnp.bfloat16))
    b1p = jnp.zeros((h_pad, 1), jnp.float32).at[:HIDDEN, 0].set(
        jnp.asarray(b1, jnp.float32).reshape(HIDDEN))
    w2p = jnp.zeros((a_dim, h_pad), jnp.bfloat16).at[:, :HIDDEN].set(
        w2.astype(jnp.bfloat16))
    b2p = jnp.asarray(b2, jnp.float32).reshape(a_dim, 1)

    # ---- batch tiling (batch is the lane axis of the output blocks) ----
    if B <= 2 * LANE:
        tb = B                      # single full-dim block: always legal
    else:
        # >=2 grid steps (keeps both v7x TensorCores busy) but never more
        # than block_b rows per step; tb a multiple of 128 keeps every output
        # block lane-dense and the x block sublane-aligned.
        tb = min(block_b, _round_up(pl.cdiv(B, 2), LANE))
    grid = (pl.cdiv(B, tb),)        # ragged last block: OOB rows discarded

    cost = pl.CostEstimate(
        flops=2 * B * (s_dim * HIDDEN + HIDDEN * a_dim),
        transcendentals=B * a_dim,                          # tanh
        bytes_accessed=(B * s_dim * x.dtype.itemsize        # x read
                        + B * a_dim * 4                     # out write (f32)
                        + 2 * (h_pad * s_dim + a_dim * h_pad)   # bf16 weights
                        + 4 * (h_pad + a_dim)),                 # f32 biases
    )

    out_t = pl.pallas_call(
        anet_kernel,
        out_shape=jax.ShapeDtypeStruct((a_dim, B), jnp.float32),
        grid=grid,
        in_specs=[
            pl.BlockSpec((tb, s_dim), lambda i: (i, 0)),     # x: tiled on B
            pl.BlockSpec((h_pad, s_dim), lambda i: (0, 0)),  # w1: resident
            pl.BlockSpec((h_pad, 1), lambda i: (0, 0)),      # b1: resident
            pl.BlockSpec((a_dim, h_pad), lambda i: (0, 0)),  # w2: resident
            pl.BlockSpec((a_dim, 1), lambda i: (0, 0)),      # b2: resident
        ],
        out_specs=pl.BlockSpec((a_dim, tb), lambda i: (0, i)),
        compiler_params=pltpu.CompilerParams(
            dimension_semantics=("parallel",),   # rows independent -> megacore
        ),
        cost_estimate=cost,
    )(x, w1p, b1p, w2p, b2p)

    # (a_dim, B) -> (B, a_dim): tiny wrapper-side transpose of the result.
    return out_t.T


def init_params(key, s_dim, a_dim):
    """PyTorch-native layouts: fc1.weight (30, s_dim), out.weight (a_dim, 30).
    Weights ~ Normal(0, 0.1) (as in the module); biases keep nn.Linear's
    default Uniform(-1/sqrt(fan_in), +1/sqrt(fan_in))."""
    k1, k2, k3, k4 = jax.random.split(key, 4)
    w1 = 0.1 * jax.random.normal(k1, (HIDDEN, s_dim), dtype=jnp.float32)
    w2 = 0.1 * jax.random.normal(k2, (a_dim, HIDDEN), dtype=jnp.float32)
    bound1 = 1.0 / (s_dim ** 0.5)
    bound2 = 1.0 / (HIDDEN ** 0.5)
    b1 = jax.random.uniform(k3, (HIDDEN,), minval=-bound1, maxval=bound1,
                            dtype=jnp.float32)
    b2 = jax.random.uniform(k4, (a_dim,), minval=-bound2, maxval=bound2,
                            dtype=jnp.float32)
    return w1, b1, w2, b2


if __name__ == "__main__":
    key = jax.random.PRNGKey(0)
    kp, kx1, kx2, kx3 = jax.random.split(key, 4)

    s_dim, a_dim = 16, 4
    w1, b1, w2, b2 = init_params(kp, s_dim, a_dim)

    # bf16 matmul inputs with f32 accumulation -> loose tolerance vs f32 ref.
    tol = dict(atol=2e-2, rtol=2e-2)

    # 1) Tiny batch forced through the Pallas path (single full-dim block).
    x1 = jax.random.normal(kx1, (8, s_dim), dtype=jnp.float32)
    o1 = jax.block_until_ready(
        anet_forward(x1, w1, b1, w2, b2, min_pallas_batch=0))
    assert o1.shape == (8, a_dim)
    assert jnp.allclose(o1, _reference(x1, w1, b1, w2, b2), **tol)

    # 2) Multi-step ragged grid (B=1000 -> tb=512, grid=(2,), ragged tail).
    x2 = jax.random.normal(kx2, (1000, s_dim), dtype=jnp.float32)
    o2 = jax.block_until_ready(
        anet_forward(x2, w1, b1, w2, b2, min_pallas_batch=0))
    assert o2.shape == (1000, a_dim)
    assert jnp.all(jnp.isfinite(o2))
    assert jnp.allclose(o2, _reference(x2, w1, b1, w2, b2), **tol)

    # 3) Default dispatch: tiny batch stays on the fused XLA fast path.
    x3 = jax.random.normal(kx3, (4, s_dim), dtype=jnp.float32)
    o3 = jax.block_until_ready(anet_forward(x3, w1, b1, w2, b2))
    assert jnp.allclose(o3, _reference(x3, w1, b1, w2, b2),
                        atol=1e-5, rtol=1e-5)

    print("KERNEL_OK")
</pallas_src>

<mosaic_0001>
module attributes {stable_mosaic.version = 11 : i64} {
  func.func @anet_kernel(%arg0: i32, %arg1: memref<8x16xf32, #tpu.memory_space<vmem>>, %arg2: memref<32x16xbf16, #tpu.memory_space<vmem>>, %arg3: memref<32x1xf32, #tpu.memory_space<vmem>>, %arg4: memref<4x32xbf16, #tpu.memory_space<vmem>>, %arg5: memref<4x1xf32, #tpu.memory_space<vmem>>, %arg6: memref<4x8xf32, #tpu.memory_space<vmem>>) attributes {dimension_semantics = [#tpu.dimension_semantics<parallel>], iteration_bounds = array<i64: 1>, scalar_prefetch = 0 : i64, scratch_operands = 0 : i64, tpu.core_type = #tpu.core_type<tc>, window_params = [{transform_indices = @transform_0, window_bounds = array<i64: 8, 16>}, {pipeline_mode = #tpu.pipeline_mode<synchronous>, transform_indices = @transform_1, window_bounds = array<i64: 32, 16>}, {pipeline_mode = #tpu.pipeline_mode<synchronous>, transform_indices = @transform_2, window_bounds = array<i64: 32, 1>}, {pipeline_mode = #tpu.pipeline_mode<synchronous>, transform_indices = @transform_3, window_bounds = array<i64: 4, 32>}, {pipeline_mode = #tpu.pipeline_mode<synchronous>, transform_indices = @transform_4, window_bounds = array<i64: 4, 1>}, {transform_indices = @transform_5, window_bounds = array<i64: 4, 8>}]} {
    %c0 = arith.constant 0 : index
    %c0_0 = arith.constant 0 : index
    %0 = vector.load %arg1[%c0, %c0_0] : memref<8x16xf32, #tpu.memory_space<vmem>>, vector<8x16xf32>
    %1 = arith.truncf %0 : vector<8x16xf32> to vector<8x16xbf16>
    %c0_1 = arith.constant 0 : index
    %c0_2 = arith.constant 0 : index
    %2 = vector.load %arg2[%c0_1, %c0_2] : memref<32x16xbf16, #tpu.memory_space<vmem>>, vector<32x16xbf16>
    %cst = arith.constant dense<0.000000e+00> : vector<32x8xf32>
    %3 = tpu.matmul %2, %1, %cst {dimension_numbers = #tpu.dot_dimension_numbers<[1], [1], [0], [0], [0, 0, 1, 0], [], []>} : vector<32x16xbf16>, vector<8x16xbf16>, vector<32x8xf32> -> vector<32x8xf32>
    %c0_3 = arith.constant 0 : index
    %c0_4 = arith.constant 0 : index
    %4 = vector.load %arg3[%c0_3, %c0_4] : memref<32x1xf32, #tpu.memory_space<vmem>>, vector<32x1xf32>
    %5 = vector.broadcast %4 : vector<32x1xf32> to vector<32x8xf32>
    %6 = arith.addf %3, %5 : vector<32x8xf32>
    %cst_5 = arith.constant 0.000000e+00 : f32
    %7 = vector.broadcast %cst_5 : f32 to vector<32x8xf32>
    %8 = arith.maximumf %6, %7 : vector<32x8xf32>
    %c0_6 = arith.constant 0 : index
    %c0_7 = arith.constant 0 : index
    %9 = vector.load %arg4[%c0_6, %c0_7] : memref<4x32xbf16, #tpu.memory_space<vmem>>, vector<4x32xbf16>
    %10 = arith.truncf %8 : vector<32x8xf32> to vector<32x8xbf16>
    %cst_8 = arith.constant dense<0.000000e+00> : vector<4x8xf32>
    %11 = tpu.matmul %9, %10, %cst_8 {dimension_numbers = #tpu.dot_dimension_numbers<[1], [0], [0], [1], [0, 0, 1, 1], [], []>} : vector<4x32xbf16>, vector<32x8xbf16>, vector<4x8xf32> -> vector<4x8xf32>
    %c0_9 = arith.constant 0 : index
    %c0_10 = arith.constant 0 : index
    %12 = vector.load %arg5[%c0_9, %c0_10] : memref<4x1xf32, #tpu.memory_space<vmem>>, vector<4x1xf32>
    %13 = vector.broadcast %12 : vector<4x1xf32> to vector<4x8xf32>
    %14 = arith.addf %11, %13 : vector<4x8xf32>
    %15 = math.tanh %14 : vector<4x8xf32>
    %c0_11 = arith.constant 0 : index
    %c0_12 = arith.constant 0 : index
    %16 = vector.load %arg6[%c0_11, %c0_12] : memref<4x8xf32, #tpu.memory_space<vmem>>, vector<4x8xf32>
    tpu.vector_store %arg6[%c0_11, %c0_12], %15 {strides = array<i32>} : memref<4x8xf32, #tpu.memory_space<vmem>>, vector<4x8xf32>,
    return
  }
  func.func @transform_0(%arg0: i32) -> (i32, i32) {
    %c0_i32 = arith.constant 0 : i32
    %c0_i32_0 = arith.constant 0 : i32
    return %arg0, %c0_i32 : i32, i32
  }
  func.func @transform_1(%arg0: i32) -> (i32, i32) {
    %c0_i32 = arith.constant 0 : i32
    %c0_i32_0 = arith.constant 0 : i32
    %c0_i32_1 = arith.constant 0 : i32
    return %c0_i32, %c0_i32_0 : i32, i32
  }
  func.func @transform_2(%arg0: i32) -> (i32, i32) {
    %c0_i32 = arith.constant 0 : i32
    %c0_i32_0 = arith.constant 0 : i32
    %c0_i32_1 = arith.constant 0 : i32
    return %c0_i32, %c0_i32_0 : i32, i32
  }
  func.func @transform_3(%arg0: i32) -> (i32, i32) {
    %c0_i32 = arith.constant 0 : i32
    %c0_i32_0 = arith.constant 0 : i32
    %c0_i32_1 = arith.constant 0 : i32
    return %c0_i32, %c0_i32_0 : i32, i32
  }
  func.func @transform_4(%arg0: i32) -> (i32, i32) {
    %c0_i32 = arith.constant 0 : i32
    %c0_i32_0 = arith.constant 0 : i32
    %c0_i32_1 = arith.constant 0 : i32
    return %c0_i32, %c0_i32_0 : i32, i32
  }
  func.func @transform_5(%arg0: i32) -> (i32, i32) {
    %c0_i32 = arith.constant 0 : i32
    %c0_i32_0 = arith.constant 0 : i32
    return %c0_i32, %arg0 : i32, i32
  }
}

</mosaic_0001>

<llo_original>
// kernel: anet_forward.1
$region0: #{anet_forward.1}
  #allocation0 [shape = 'u32[]', space=smem, size = 0x4, offset = 0x4, fixed_abs, tag = 'smem constant byte address 0x4 - core index']
  #allocation1 [shape = 'u32[144,128]{1,0:T(1,128)}', space=vmem, size = 0x12000, scoped, tag = 'internal scratch']
  %s0 = inlined_call_operand.vmem [shape: f32[8,16], index: 0, kind: input, shape index: {}]
  %s1 = inlined_call_operand.vmem [shape: bf16[32,16], index: 1, kind: input, shape index: {}]
  %s2 = inlined_call_operand.vmem [shape: f32[32,1], index: 2, kind: input, shape index: {}]
  %s3 = inlined_call_operand.vmem [shape: bf16[4,32], index: 3, kind: input, shape index: {}]
  %s4 = inlined_call_operand.vmem [shape: f32[4,1], index: 4, kind: input, shape index: {}]
  %s5 = inlined_call_operand.hbm [shape: f32[4,8], index: 5, kind: output, shape index: {}]
  %s6 = sld [smem:[#allocation0]]
  $region30: #{anet_forward.1} parent=0
    _
  %s8 = ssub.s32 1, %s6
  %s9 = scalar_select 0, %s8, %s6
  $region1: #{anet_forward.1} parent=0
    #allocation2 [shape = 'u8[2048]{0}', space=vmem, size = 0x800, scoped, tag = 'output window, operand 0, single buffered']
    #allocation3 [shape = 's32[1]{0}', space=sflag, size = 0x4, scoped, tag = 'scoped memory for anet_forward.1']
    %10 = vsyncpa [#allocation3], 0
    // Predicated region
    $region2: #{anet_forward.1} parent=1 // pred_check
      _
    $region3: #{anet_forward.1} parent=1 // pred_check_branch
      %12 = sbr.rel (0) target = $region5
    $region4: #{anet_forward.1} parent=1 // pred_region
      _
    $region5: #{anet_forward.1} parent=1 // pred_fallthru
      _
    // Predicated region
    $region6: #{anet_forward.1} parent=1 // pred_check
      _
    $region7: #{anet_forward.1} parent=1 // pred_check_branch
      %14 = sbr.rel (0) target = $region9
    $region8: #{anet_forward.1} parent=1 // pred_region
      _
    $region9: #{anet_forward.1} parent=1 // pred_fallthru
      _
    // Predicated region
    $region10: #{anet_forward.1} parent=1 // pred_check
      _
    $region11: #{anet_forward.1} parent=1 // pred_check_branch
      %16 = sbr.rel (0) target = $region13
    $region12: #{anet_forward.1} parent=1 // pred_region
      _
    $region13: #{anet_forward.1} parent=1 // pred_fallthru
      _
    // Predicated region
    $region14: #{anet_forward.1} parent=1 // pred_check
      _
    $region15: #{anet_forward.1} parent=1 // pred_check_branch
      %18 = sbr.rel (0) target = $region17
    $region16: #{anet_forward.1} parent=1 // pred_region
      _
    $region17: #{anet_forward.1} parent=1 // pred_fallthru
      _
    // Predicated region
    $region18: #{anet_forward.1} parent=1 // pred_check
      _
    $region19: #{anet_forward.1} parent=1 // pred_check_branch
      %20 = sbr.rel (0) target = $region21
    $region20: #{anet_forward.1} parent=1 // pred_region
      _
    $region21: #{anet_forward.1} parent=1 // pred_fallthru
      _
    %v22 = vld [vmem:[%s0] sm:$0xff]
    %v23 = vpack.c.bf16 %v22, %v22
    %v24 = vld [vmem:[%s1] sm:$0xf]
    %v25 = vld [vmem:[%s1 + $0x4] sm:$0xf]
    %v26 = vld [vmem:[%s1 + $0x8] sm:$0xf]
    %v27 = vld [vmem:[%s1 + $0xc] sm:$0xf]
    %v28 = vld [vmem:[%s2] sm:$0xff]
    %v29 = vld [vmem:[%s2 + $0x8] sm:$0xff]
    %v30 = vld [vmem:[%s2 + $0x10] sm:$0xff]
    %v31 = vld [vmem:[%s2 + $0x18] sm:$0xff]
    %33 = vset.pattern.permute.xlu0 0
    %34 = vperm.xlu0 %33, %v28
    %v35 = vpop.permute.xlu0 %34
    %38 = vset.pattern.permute.xlu0 0
    %39 = vperm.xlu0 %38, %v29
    %v40 = vpop.permute.xlu0 %39
    %43 = vset.pattern.permute.xlu0 0
    %44 = vperm.xlu0 %43, %v30
    %v45 = vpop.permute.xlu0 %44
    %48 = vset.pattern.permute.xlu0 0
    %49 = vperm.xlu0 %48, %v31
    %v50 = vpop.permute.xlu0 %49
    %v56 = vunpack.c.l.b16 %v24
    %v57 = vunpack.c.l.b16 %v25
    %v58 = vunpack.c.l.b16 %v26
    %v59 = vunpack.c.l.b16 %v27
    %v60 = vpack.c.b16 %v57, %v56
    %v61 = vpack.c.b16 %v59, %v58
    %vm62 = vcmask 130048
    %v64 = vsel %vm62, %v60, 0
    %v67 = vsel %vm62, %v61, 0
    %v70 = vsel %vm62, %v23, 0
    %72 = vmatprep.subr.bf16.mxu0 0
    %73 = vmatpush1.bf16.xpose.msra.mxu0 %v70
    %74 = vmatprep.subr.bf16.mxu0 0
    %75 = vmatpush1.bf16.xpose.msra.mxu0 0
    %76 = vmatprep.subr.bf16.mxu0 0
    %77 = vmatpush1.bf16.xpose.msra.mxu0 0
    %78 = vmatprep.subr.bf16.mxu0 0
    %79 = vmatpush1.bf16.xpose.msra.mxu0 0
    %80 = vmatprep.subr.bf16.mxu0 0
    %81 = vmatpush1.bf16.xpose.msra.mxu0 0
    %82 = vmatprep.subr.bf16.mxu0 0
    %83 = vmatpush1.bf16.xpose.msra.mxu0 0
    %84 = vmatprep.subr.bf16.mxu0 0
    %85 = vmatpush1.bf16.xpose.msra.mxu0 0
    %86 = vmatprep.subr.bf16.mxu0 0
    %87 = vmatpush1.bf16.xpose.msra.mxu0 0
    %88 = vmatprep.subr.bf16.mxu0 0
    %89 = vmatpush1.bf16.xpose.msra.mxu0 0
    %90 = vmatprep.subr.bf16.mxu0 0
    %91 = vmatpush1.bf16.xpose.msra.mxu0 0
    %92 = vmatprep.subr.bf16.mxu0 0
    %93 = vmatpush1.bf16.xpose.msra.mxu0 0
    %94 = vmatprep.subr.bf16.mxu0 0
    %95 = vmatpush1.bf16.xpose.msra.mxu0 0
    %96 = vmatprep.subr.bf16.mxu0 0
    %97 = vmatpush1.bf16.xpose.msra.mxu0 0
    %98 = vmatprep.subr.bf16.mxu0 0
    %99 = vmatpush1.bf16.xpose.msra.mxu0 0
    %100 = vmatprep.subr.bf16.mxu0 0
    %101 = vmatpush1.bf16.xpose.msra.mxu0 0
    %102 = vmatprep.subr.bf16.mxu0 0
    %103 = vmatpush1.bf16.xpose.msra.mxu0 0
    %104 = vmatprep.mubr.bf16.mxu0 0
    %105 = vmatmul.mubr.bf16.gmra.mrb[0].mxu0 %v64
    %v106 = vpop.f32.mrb[0].mxu0
    %v107 = vadd.f32 %v35, %v106
    %v108 = vpop.f32.mrb[0].mxu0
    %v109 = vpop.f32.mrb[0].mxu0
    %v110 = vadd.f32 %v40, %v109
    %v111 = vpop.f32.mrb[0].mxu0
    %112 = vmatprep.mubr.bf16.mxu0 0
    %113 = vmatmul.mubr.bf16.gmra.mrb[0].mxu0 %v67
    %v114 = vpop.f32.mrb[0].mxu0
    %v115 = vadd.f32 %v45, %v114
    %v116 = vpop.f32.mrb[0].mxu0
    %v117 = vpop.f32.mrb[0].mxu0
    %v118 = vadd.f32 %v50, %v117
    %v119 = vpop.f32.mrb[0].mxu0
    %120 = vdwg.mxu0
    %v121 = vmax.f32 %v107, 0.0
    %v122 = vmax.f32 %v110, 0.0
    %v123 = vmax.f32 %v115, 0.0
    %v124 = vmax.f32 %v118, 0.0
    %v125 = vld [vmem:[%s3] sm:$0x3]
    %v126 = vpack.c.bf16 %v122, %v121
    %v127 = vpack.c.bf16 %v124, %v123
    %v128 = vld [vmem:[%s4] sm:$0xf]
    %130 = vset.pattern.permute.xlu0 0
    %131 = vperm.xlu0 %130, %v128
    %v132 = vpop.permute.xlu0 %131
    %vm134 = vcmask 261120
    %v136 = vsel %vm134, %v125, 0
    %138 = vmatprep.subr.bf16.mxu0 0
    %139 = vmatpush1.bf16.msra.mxu0 %v126
    %140 = vmatprep.subr.bf16.mxu0 0
    %141 = vmatpush1.bf16.msra.mxu0 %v127
    %142 = vmatprep.subr.bf16.mxu0 0
    %143 = vmatpush1.bf16.msra.mxu0 0
    %144 = vmatprep.subr.bf16.mxu0 0
    %145 = vmatpush1.bf16.msra.mxu0 0
    %146 = vmatprep.subr.bf16.mxu0 0
    %147 = vmatpush1.bf16.msra.mxu0 0
    %148 = vmatprep.subr.bf16.mxu0 0
    %149 = vmatpush1.bf16.msra.mxu0 0
    %150 = vmatprep.subr.bf16.mxu0 0
    %151 = vmatpush1.bf16.msra.mxu0 0
    %152 = vmatprep.subr.bf16.mxu0 0
    %153 = vmatpush1.bf16.msra.mxu0 0
    %154 = vmatprep.subr.bf16.mxu0 0
    %155 = vmatpush1.bf16.msra.mxu0 0
    %156 = vmatprep.subr.bf16.mxu0 0
    %157 = vmatpush1.bf16.msra.mxu0 0
    %158 = vmatprep.subr.bf16.mxu0 0
    %159 = vmatpush1.bf16.msra.mxu0 0
    %160 = vmatprep.subr.bf16.mxu0 0
    %161 = vmatpush1.bf16.msra.mxu0 0
    %162 = vmatprep.subr.bf16.mxu0 0
    %163 = vmatpush1.bf16.msra.mxu0 0
    %164 = vmatprep.subr.bf16.mxu0 0
    %165 = vmatpush1.bf16.msra.mxu0 0
    %166 = vmatprep.subr.bf16.mxu0 0
    %167 = vmatpush1.bf16.msra.mxu0 0
    %168 = vmatprep.subr.bf16.mxu0 0
    %169 = vmatpush1.bf16.msra.mxu0 0
    %170 = vmatprep.mubr.bf16.mxu0 0
    %171 = vmatmul.mubr.bf16.gmra.mrb[0].mxu0 %v136
    %v172 = vpop.f32.mrb[0].mxu0
    %v173 = vadd.f32 %v132, %v172
    %v174 = vpop.f32.mrb[0].mxu0
    %v175 = vpop.f32.mrb[0].mxu0
    %v176 = vpop.f32.mrb[0].mxu0
    %177 = vdwg.mxu0
    %v178 = vtanh.pop %v173
    %vm179 = vcmask 60416
    %180 = vst.msk [vmem:[#allocation2] sm:$0xf] %vm179, %v178
    // Predicated region
    $region22: #{anet_forward.1} parent=1 // pred_check
      _
    $region23: #{anet_forward.1} parent=1 // pred_check_branch
      %182 = sbr.rel (0) target = $region25
    $region24: #{anet_forward.1} parent=1 // pred_region
      %s184 = ssub.s32 64, 64
      %185 = vsyncadd [#allocation3], %s184
      %s187 = sshll.u32 [#allocation2], 4
      %s188 = int_to_ptr.vmem [resolvable:$true] %s187
      %190 = dma.vmem_to_hbm [thread:$0]  %s188, 64, %s5, [#allocation3]
    $region25: #{anet_forward.1} parent=1 // pred_fallthru
      _
    // Predicated region
    $region26: #{anet_forward.1} parent=1 // pred_check
      _
    $region27: #{anet_forward.1} parent=1 // pred_check_branch
      %192 = sbr.rel (0) target = $region29
    $region28: #{anet_forward.1} parent=1 // pred_region
      %193 = dma.done [#allocation3], 64
    $region29: #{anet_forward.1} parent=1 // pred_fallthru
      _
    %194 = vsyncpa [#allocation3], 1

</llo_original>
